<compile_context>
chip_gen: v5e
topology: v5e:2x2
jax: 0.10.0
libtpu: 0.0.40
codegen_flags: <defaults>
</compile_context>

<pallas_src>
import functools

import jax
import jax.numpy as jnp
from jax.experimental import pallas as pl
from jax.experimental.pallas import tpu as pltpu


def _pool_kernel(x_ref, sum_ref, max_ref, *, hw, s_tile, ragged):
    """Accumulate per-channel spatial sum and max.

    x_ref   : (1, c_tile, s_tile)  input tile, spatial on the lane axis.
    sum_ref : (1, c_tile, 1) f32   output block, constant index across the
                                   spatial grid axis -> used as accumulator.
    max_ref : (1, c_tile, 1) f32   ditto for the running max.
    """
    si = pl.program_id(2)
    n_s = pl.num_programs(2)

    @pl.when(si == 0)
    def _init():
        sum_ref[...] = jnp.zeros(sum_ref.shape, jnp.float32)
        max_ref[...] = jnp.full(max_ref.shape, -jnp.inf, jnp.float32)

    x = x_ref[...]  # streamed in native dtype; upcast only where needed

    def _accum(x_sum, x_max):
        # Cross-lane reduces go to the XLU slot; sum accumulates in f32,
        # max reduces in the native dtype and casts the tiny result.
        sum_ref[...] += jnp.sum(x_sum.astype(jnp.float32), axis=-1,
                                keepdims=True)
        max_ref[...] = jnp.maximum(
            max_ref[...],
            jnp.max(x_max, axis=-1, keepdims=True).astype(jnp.float32))

    if ragged:
        # Fast, unmasked path for every full block ...
        @pl.when(si < n_s - 1)
        def _fast():
            _accum(x, x)

        # ... masking (0 for sum, -inf for max) only on the last, partial one.
        @pl.when(si == n_s - 1)
        def _tail():
            lane = jax.lax.broadcasted_iota(jnp.int32, x.shape, 2)
            valid = (si * s_tile + lane) < hw
            _accum(jnp.where(valid, x, 0.0), jnp.where(valid, x, -jnp.inf))
    else:
        _accum(x, x)


def _vmem_capacity_bytes():
    try:
        cap = getattr(pltpu.get_tpu_info(), "vmem_capacity_bytes", None)
        if cap:
            return int(cap)
    except Exception:
        pass
    return 64 * 1024 * 1024  # conservative default (v7x-sized)


def _pick_c_tile(b, c, itemsize, block_bytes, pack):
    c_tile = c
    # (a) keep even a minimal 128-lane slice of the block within the budget.
    while c_tile * 128 * itemsize > block_bytes and c_tile % (2 * pack) == 0:
        c_tile //= 2
    # (b) v7x megacore: with batch < 2, split channels once so both
    #     TensorCores have independent "parallel" grid work.
    if b < 2 and c_tile == c and c % (2 * pack) == 0:
        c_tile = c // 2
    return c_tile


def _pick_s_tile(hw, c_tile, itemsize, block_bytes):
    max_lanes = max(128, block_bytes // max(1, c_tile * itemsize))
    if hw <= max_lanes:
        return hw, 1                     # single full-extent spatial block
    st = (max_lanes // 128) * 128
    # Prefer a lane-multiple that divides hw exactly (no masking at all), as
    # long as it stays within 2x of the byte-budget tile.
    for cand in range(st, st // 2 - 1, -128):
        if cand >= 128 and hw % cand == 0:
            return cand, hw // cand
    return st, pl.cdiv(hw, st)


def channel_attention(x, w1, w2, *, block_bytes=None):
    """x : (B, C, H, W) NCHW, f32 or bf16 (streamed in its own dtype).
    w1: PyTorch fc[0].weight, shape (C//r, C), no bias.
    w2: PyTorch fc[2].weight, shape (C, C//r), no bias.
    Returns attention of shape (B, C, 1, 1) in x.dtype.
    """
    b, c, h, w = x.shape
    hw = h * w
    cr = w1.shape[0]
    assert w1.shape == (cr, c) and w2.shape == (c, cr)

    itemsize = jnp.dtype(x.dtype).itemsize
    pack = 32 // itemsize                      # sublane pack: 8 f32 / 16 bf16
    vmem_cap = _vmem_capacity_bytes()
    if block_bytes is None:
        # ~2-4 MiB blocks reach HBM roofline; allow 8 MiB on 128 MiB parts.
        block_bytes = (8 << 20) if vmem_cap >= (96 << 20) else (4 << 20)

    c_tile = _pick_c_tile(b, c, itemsize, block_bytes, pack)
    n_c = c // c_tile
    s_tile, n_s = _pick_s_tile(hw, c_tile, itemsize, block_bytes)
    ragged = (n_s > 1) and (hw % s_tile != 0)

    # Free, contiguous view of NCHW: channels on sublanes, spatial on lanes.
    x3 = x.reshape(b, c, hw)

    # VMEM budget from actual buffer counts: 2x double-buffered input block
    # + slack for in-kernel f32 temporaries (cast / masked variants) + misc.
    blk = c_tile * s_tile * itemsize
    blk_f32 = c_tile * s_tile * 4
    vmem_limit = 2 * blk + 2 * blk_f32 + (2 << 20)
    vmem_limit = max(vmem_limit, 16 << 20)
    vmem_limit = min(vmem_limit, max(16 << 20, vmem_cap - (8 << 20)))

    kernel = functools.partial(_pool_kernel, hw=hw, s_tile=s_tile,
                               ragged=ragged)

    sums, maxes = pl.pallas_call(
        kernel,
        out_shape=(jax.ShapeDtypeStruct((b, c, 1), jnp.float32),
                   jax.ShapeDtypeStruct((b, c, 1), jnp.float32)),
        grid_spec=pltpu.PrefetchScalarGridSpec(
            num_scalar_prefetch=0,
            grid=(b, n_c, n_s),                 # reduction innermost
            in_specs=[
                pl.BlockSpec((1, c_tile, s_tile),
                             lambda bi, ci, si: (bi, ci, si)),
            ],
            out_specs=[
                pl.BlockSpec((1, c_tile, 1), lambda bi, ci, si: (bi, ci, 0)),
                pl.BlockSpec((1, c_tile, 1), lambda bi, ci, si: (bi, ci, 0)),
            ],
        ),
        compiler_params=pltpu.CompilerParams(
            dimension_semantics=("parallel", "parallel", "arbitrary"),
            vmem_limit_bytes=int(vmem_limit),
        ),
    )(x3)

    # Tiny shared MLP + sigmoid, batched over all 2B pooled rows in XLA
    # (one (2B, C) @ (C, C//r) matmul — hoisted out of the kernel per review).
    avg = sums[..., 0] * (1.0 / float(hw))      # (B, C) f32, true H*W divisor
    mx = maxes[..., 0]                          # (B, C) f32
    stacked = jnp.concatenate([avg, mx], axis=0)            # (2B, C)
    w1f = w1.astype(jnp.float32)
    w2f = w2.astype(jnp.float32)
    hdn = jnp.maximum(stacked @ w1f.T, 0.0)                  # (2B, C//r)
    out = hdn @ w2f.T                                        # (2B, C)
    att = jax.nn.sigmoid(out[:b] + out[b:])                  # (B, C)

    # TODO(synk): self.attention_weights (detached .cpu().numpy() cache) is
    # host-side module state, not part of the kernel.
    return att.astype(x.dtype).reshape(b, c, 1, 1)


def _reference(x, w1, w2):
    """Pure-JAX reference (f32) for verification."""
    xf = x.astype(jnp.float32)
    avg = jnp.mean(xf, axis=(2, 3))
    mx = jnp.max(xf, axis=(2, 3))

    def fc(v):
        hdn = jnp.maximum(v @ w1.T.astype(jnp.float32), 0.0)
        return hdn @ w2.T.astype(jnp.float32)

    bb, cc = avg.shape
    return jax.nn.sigmoid(fc(avg) + fc(mx)).reshape(bb, cc, 1, 1)


if __name__ == "__main__":
    # channels=32, reduction=16 -> hidden=2 (consistent with the module).
    key = jax.random.PRNGKey(0)
    k_x, k_w1, k_w2, k_x2, k_x3 = jax.random.split(key, 5)

    B, C, H, W = 2, 32, 16, 16
    reduction = 16
    hidden = C // reduction

    x = jax.random.normal(k_x, (B, C, H, W), dtype=jnp.float32)
    # PyTorch Linear weight convention: (out_features, in_features), no bias.
    w1 = jax.random.normal(k_w1, (hidden, C), dtype=jnp.float32) * 0.1
    w2 = jax.random.normal(k_w2, (C, hidden), dtype=jnp.float32) * 0.1

    # Test 1: f32, default tiling (single full-extent spatial block).
    out = jax.block_until_ready(channel_attention(x, w1, w2))
    ref = _reference(x, w1, w2)
    assert out.shape == (B, C, 1, 1)
    assert jnp.allclose(out, ref, atol=1e-4, rtol=1e-4), "f32 mismatch (test 1)"

    # Test 2: f32, small forced blocks -> 2 non-ragged spatial steps.
    out = jax.block_until_ready(
        channel_attention(x, w1, w2, block_bytes=16 * 1024))
    assert jnp.allclose(out, ref, atol=1e-4, rtol=1e-4), "f32 mismatch (test 2)"

    # Test 3: bf16 streaming + ragged last spatial block (15*15=225, tile 128).
    x2 = jax.random.normal(k_x2, (B, C, 15, 15),
                           dtype=jnp.float32).astype(jnp.bfloat16)
    out2 = jax.block_until_ready(
        channel_attention(x2, w1, w2, block_bytes=8 * 1024))
    ref2 = _reference(x2, w1, w2)
    assert out2.shape == (B, C, 1, 1)
    assert jnp.allclose(out2.astype(jnp.float32), ref2, atol=2e-2, rtol=2e-2), \
        "bf16 mismatch (test 3)"

    # Test 4: batch=1 -> channel-tile split (megacore path), f32.
    x3 = jax.random.normal(k_x3, (1, C, H, W), dtype=jnp.float32)
    out3 = jax.block_until_ready(channel_attention(x3, w1, w2))
    ref3 = _reference(x3, w1, w2)
    assert out3.shape == (1, C, 1, 1)
    assert jnp.allclose(out3, ref3, atol=1e-4, rtol=1e-4), "f32 mismatch (test 4)"

    print("KERNEL_OK")
</pallas_src>

<mosaic_0001>
module attributes {stable_mosaic.version = 11 : i64} {
  func.func @_pool_kernel(%arg0: i32, %arg1: i32, %arg2: i32, %arg3: memref<1x32x256xf32, #tpu.memory_space<vmem>>, %arg4: memref<1x32x1xf32, #tpu.memory_space<vmem>>, %arg5: memref<1x32x1xf32, #tpu.memory_space<vmem>>) attributes {dimension_semantics = [#tpu.dimension_semantics<parallel>, #tpu.dimension_semantics<parallel>, #tpu.dimension_semantics<arbitrary>], iteration_bounds = array<i64: 2, 1, 1>, scalar_prefetch = 0 : i64, scratch_operands = 0 : i64, tpu.core_type = #tpu.core_type<tc>, window_params = [{transform_indices = @transform_0, window_bounds = array<i64: 1, 32, 256>}, {transform_indices = @transform_1, window_bounds = array<i64: 1, 32, 1>}, {transform_indices = @transform_2, window_bounds = array<i64: 1, 32, 1>}]} {
    %c0_i32 = arith.constant 0 : i32
    %0 = arith.cmpi eq, %arg2, %c0_i32 : i32
    %1 = arith.extui %0 : i1 to i32
    %c0_i32_0 = arith.constant 0 : i32
    %2 = arith.cmpi ne, %1, %c0_i32_0 : i32
    scf.if %2 {
      %cst_16 = arith.constant 0.000000e+00 : f32
      %14 = vector.broadcast %cst_16 : f32 to vector<1x32x1xf32>
      %c0_17 = arith.constant 0 : index
      %c0_18 = arith.constant 0 : index
      %c0_19 = arith.constant 0 : index
      %15 = vector.load %arg4[%c0_17, %c0_18, %c0_19] : memref<1x32x1xf32, #tpu.memory_space<vmem>>, vector<1x32x1xf32>
      tpu.vector_store %arg4[%c0_17, %c0_18, %c0_19], %14 {strides = array<i32>} : memref<1x32x1xf32, #tpu.memory_space<vmem>>, vector<1x32x1xf32>,
      %cst_20 = arith.constant 0xFF800000 : f32
      %16 = vector.broadcast %cst_20 : f32 to vector<1x32x1xf32>
      %c0_21 = arith.constant 0 : index
      %c0_22 = arith.constant 0 : index
      %c0_23 = arith.constant 0 : index
      %17 = vector.load %arg5[%c0_21, %c0_22, %c0_23] : memref<1x32x1xf32, #tpu.memory_space<vmem>>, vector<1x32x1xf32>
      tpu.vector_store %arg5[%c0_21, %c0_22, %c0_23], %16 {strides = array<i32>} : memref<1x32x1xf32, #tpu.memory_space<vmem>>, vector<1x32x1xf32>,
    } else {
    }
    %c0 = arith.constant 0 : index
    %c0_1 = arith.constant 0 : index
    %c0_2 = arith.constant 0 : index
    %3 = vector.load %arg3[%c0, %c0_1, %c0_2] : memref<1x32x256xf32, #tpu.memory_space<vmem>>, vector<1x32x256xf32>
    %c0_3 = arith.constant 0 : index
    %c0_4 = arith.constant 0 : index
    %c0_5 = arith.constant 0 : index
    %4 = vector.load %arg4[%c0_3, %c0_4, %c0_5] : memref<1x32x1xf32, #tpu.memory_space<vmem>>, vector<1x32x1xf32>
    %cst = arith.constant dense<0.000000e+00> : vector<1x32xf32>
    %5 = vector.multi_reduction <add>, %3, %cst [2] : vector<1x32x256xf32> to vector<1x32xf32>
    %6 = vector.shape_cast %5 : vector<1x32xf32> to vector<1x32x1xf32>
    %7 = arith.addf %4, %6 : vector<1x32x1xf32>
    %c0_6 = arith.constant 0 : index
    %c0_7 = arith.constant 0 : index
    %c0_8 = arith.constant 0 : index
    %8 = vector.load %arg4[%c0_6, %c0_7, %c0_8] : memref<1x32x1xf32, #tpu.memory_space<vmem>>, vector<1x32x1xf32>
    tpu.vector_store %arg4[%c0_6, %c0_7, %c0_8], %7 {strides = array<i32>} : memref<1x32x1xf32, #tpu.memory_space<vmem>>, vector<1x32x1xf32>,
    %c0_9 = arith.constant 0 : index
    %c0_10 = arith.constant 0 : index
    %c0_11 = arith.constant 0 : index
    %9 = vector.load %arg5[%c0_9, %c0_10, %c0_11] : memref<1x32x1xf32, #tpu.memory_space<vmem>>, vector<1x32x1xf32>
    %cst_12 = arith.constant dense<0xFF800000> : vector<1x32xf32>
    %10 = vector.multi_reduction <maximumf>, %3, %cst_12 [2] : vector<1x32x256xf32> to vector<1x32xf32>
    %11 = vector.shape_cast %10 : vector<1x32xf32> to vector<1x32x1xf32>
    %12 = arith.maximumf %9, %11 : vector<1x32x1xf32>
    %c0_13 = arith.constant 0 : index
    %c0_14 = arith.constant 0 : index
    %c0_15 = arith.constant 0 : index
    %13 = vector.load %arg5[%c0_13, %c0_14, %c0_15] : memref<1x32x1xf32, #tpu.memory_space<vmem>>, vector<1x32x1xf32>
    tpu.vector_store %arg5[%c0_13, %c0_14, %c0_15], %12 {strides = array<i32>} : memref<1x32x1xf32, #tpu.memory_space<vmem>>, vector<1x32x1xf32>,
    return
  }
  func.func @transform_0(%arg0: i32, %arg1: i32, %arg2: i32) -> (i32, i32, i32) {
    %c0_i32 = arith.constant 0 : i32
    return %arg0, %arg1, %arg2 : i32, i32, i32
  }
  func.func @transform_1(%arg0: i32, %arg1: i32, %arg2: i32) -> (i32, i32, i32) {
    %c0_i32 = arith.constant 0 : i32
    %c0_i32_0 = arith.constant 0 : i32
    return %arg0, %arg1, %c0_i32 : i32, i32, i32
  }
  func.func @transform_2(%arg0: i32, %arg1: i32, %arg2: i32) -> (i32, i32, i32) {
    %c0_i32 = arith.constant 0 : i32
    %c0_i32_0 = arith.constant 0 : i32
    return %arg0, %arg1, %c0_i32 : i32, i32, i32
  }
}

</mosaic_0001>

<llo_original>
// kernel: tpu_custom_call.1
$region0: #{tpu_custom_call.1}
  #allocation0 [shape = 'u32[]', space=smem, size = 0x4, offset = 0x4, fixed_abs, tag = 'smem constant byte address 0x4 - core index']
  #allocation1 [shape = 'u32[72,128]{1,0:T(1,128)}', space=vmem, size = 0x9000, scoped, tag = 'internal scratch']
  %s0 = inlined_call_operand.hbm [shape: f32[2,32,256], index: 0, kind: input, shape index: {}]
  %s1 = inlined_call_operand.vmem [shape: f32[2,32,1], index: 1, kind: output, shape index: {0}]
  %s2 = inlined_call_operand.vmem [shape: f32[2,32,1], index: 2, kind: output, shape index: {1}]
  %3 = xla_tuple %s1, %s2
  %s4 = sld [smem:[#allocation0]]
  $region53: #{tpu_custom_call.1} parent=0
    _
  %s6 = ssub.s32 1, %s4
  %s7 = scalar_select 0, %s6, %s4
  $region1: #{tpu_custom_call.1} parent=0
    #allocation2 [shape = 'u8[65536]{0}', space=vmem, size = 0x10000, scoped, tag = 'input window, operand 0']
    #allocation3 [shape = 's32[2]{0}', space=sflag, size = 0x8, scoped, tag = 'scoped memory for tpu_custom_call.1']
    %8 = vsyncpa [#allocation3], 0
    %s9 = scalar_lea.sflag [#allocation3], 1
    %10 = vsyncpa %s9, 0
    loop: start=0, step=1, limit=4
    $region2: #{tpu_custom_call.1} parent=1 // loop_pre_header
      _
    $region3: #{tpu_custom_call.1} parent=1 // loop_header
      %s12 = sphi 0, %s16
      %p13 = scmp.ge.s32.totalorder %s12, 4
      %s19 = sphi 0, %s38
      %s20 = sphi 0, %s34
      %s21 = sphi 0, %s30
      %s22 = sphi 0, %s19
      %s23 = sphi 0, %s20
      %s24 = sphi 0, %s21
      %s25 = sphi 0, %s22
      %s26 = sphi 0, %s23
      %s27 = sphi 0, %s24
      %s45 = sphi 0, %s47
      %s48 = sphi 0, %s45
      %s49 = sphi 0, %s48
      %s65 = sphi 0, %s49
      %s73 = sphi 0, %s75
      %s76 = sphi 0, %s73
      %s77 = sphi 0, %s76
      %s93 = sphi 0, %s77
      %s101 = sphi 0, %s103
      %s104 = sphi 0, %s101
      %s105 = sphi 0, %s104
      %s121 = sphi 0, %s105
    $region4: #{tpu_custom_call.1} parent=1 // loop_header_branch
      %15 = sbr.rel (%p13) target = $region8
    $region5: #{tpu_custom_call.1} parent=1 // loop_body
      %s17 = ssub.s32 %s12, 1
      %s18 = ssub.s32 %s12, 2
      %s28 = sadd.s32 1, %s21
      %p29 = scmp.ge.s32.totalorder %s28, 1
      %s30 = scalar_select %p29, 0, %s28
      %s31 = sadd.s32 1, %s20
      %s32 = scalar_select %p29, %s31, %s20
      %p33 = scmp.ge.s32.totalorder %s32, 1
      %s34 = scalar_select %p33, 0, %s32
      %s35 = sadd.s32 1, %s19
      %s36 = scalar_select %p33, %s35, %s19
      %p37 = scmp.ge.s32.totalorder %s36, 2
      %s38 = scalar_select %p37, 0, %s36
      %s39 = ssub.s32 %s19, %s38
      %s40 = ssub.s32 %s20, %s34
      %s41 = sor.u32 %s39, %s40
      %s42 = ssub.s32 %s21, %s30
      %s43 = sor.u32 %s41, %s42
      %p44 = scmp.eq.s32.totalorder %s43, 0
      %s46 = sadd.s32 %s45, 1
      %s47 = scalar_select %p44, %s45, %s46
      %p50 = pneg %p44
      %p51 = scmp.eq.s32.totalorder %s12, 1
      %p52 = por %p50, %p51
      %p53 = scmp.ne.s32.totalorder %s45, %s48
      %p54 = scmp.eq.s32.totalorder %s12, 0
      %p55 = por %p53, %p54
      %p56 = scmp.ne.s32.totalorder %s45, %s48
      %p57 = scmp.eq.s32.totalorder %s17, 1
      %p58 = por %p56, %p57
      %p59 = scmp.ne.s32.totalorder %s48, %s49
      %p60 = scmp.eq.s32.totalorder %s17, 0
      %p61 = por %p59, %p60
      %p62 = scmp.ne.s32.totalorder %s48, %s49
      %p63 = scmp.eq.s32.totalorder %s18, 1
      %p64 = por %p62, %p63
      %p66 = scmp.ne.s32.totalorder %s49, %s65
      %p67 = scmp.eq.s32.totalorder %s18, 0
      %p68 = por %p66, %p67
      %s69 = ssub.s32 %s19, %s38
      %s70 = ssub.s32 %s20, %s34
      %s71 = sor.u32 %s69, %s70
      %p72 = scmp.eq.s32.totalorder %s71, 0
      %s74 = sadd.s32 %s73, 1
      %s75 = scalar_select %p72, %s73, %s74
      %p78 = pneg %p72
      %p79 = scmp.eq.s32.totalorder %s12, 1
      %p80 = por %p78, %p79
      %p81 = scmp.ne.s32.totalorder %s73, %s76
      %p82 = scmp.eq.s32.totalorder %s12, 0
      %p83 = por %p81, %p82
      %p84 = scmp.ne.s32.totalorder %s73, %s76
      %p85 = scmp.eq.s32.totalorder %s17, 1
      %p86 = por %p84, %p85
      %p87 = scmp.ne.s32.totalorder %s76, %s77
      %p88 = scmp.eq.s32.totalorder %s17, 0
      %p89 = por %p87, %p88
      %p90 = scmp.ne.s32.totalorder %s76, %s77
      %p91 = scmp.eq.s32.totalorder %s18, 1
      %p92 = por %p90, %p91
      %p94 = scmp.ne.s32.totalorder %s77, %s93
      %p95 = scmp.eq.s32.totalorder %s18, 0
      %p96 = por %p94, %p95
      %s97 = ssub.s32 %s19, %s38
      %s98 = ssub.s32 %s20, %s34
      %s99 = sor.u32 %s97, %s98
      %p100 = scmp.eq.s32.totalorder %s99, 0
      %s102 = sadd.s32 %s101, 1
      %s103 = scalar_select %p100, %s101, %s102
      %p106 = pneg %p100
      %p107 = scmp.eq.s32.totalorder %s12, 1
      %p108 = por %p106, %p107
      %p109 = scmp.ne.s32.totalorder %s101, %s104
      %p110 = scmp.eq.s32.totalorder %s12, 0
      %p111 = por %p109, %p110
      %p112 = scmp.ne.s32.totalorder %s101, %s104
      %p113 = scmp.eq.s32.totalorder %s17, 1
      %p114 = por %p112, %p113
      %p115 = scmp.ne.s32.totalorder %s104, %s105
      %p116 = scmp.eq.s32.totalorder %s17, 0
      %p117 = por %p115, %p116
      %p118 = scmp.ne.s32.totalorder %s104, %s105
      %p119 = scmp.eq.s32.totalorder %s18, 1
      %p120 = por %p118, %p119
      %p122 = scmp.ne.s32.totalorder %s105, %s121
      %p123 = scmp.eq.s32.totalorder %s18, 0
      %p124 = por %p122, %p123
      %p125 = scmp.le.s32.totalorder 1, %s12
      %p126 = scmp.lt.s32.totalorder %s12, 3
      %p127 = pnand %p125, %p126
      %p128 = pneg %p127
      // Predicated region
      $region9: #{tpu_custom_call.1} parent=5 // pred_check
        _
      $region10: #{tpu_custom_call.1} parent=5 // pred_check_branch
        %130 = sbr.rel (%p127) target = $region12
      $region11: #{tpu_custom_call.1} parent=5 // pred_region
        %s131 = ssub.s32 %s12, 1
      $region12: #{tpu_custom_call.1} parent=5 // pred_fallthru
        _
      %p132 = scmp.lt.s32.totalorder %s12, 2
      // Predicated region
      $region13: #{tpu_custom_call.1} parent=5 // pred_check
        %p133 = pneg %p132
      $region14: #{tpu_custom_call.1} parent=5 // pred_check_branch
        %135 = sbr.rel (%p133) target = $region16
      $region15: #{tpu_custom_call.1} parent=5 // pred_region
        // Predicated region
        $region17: #{tpu_custom_call.1} parent=15 // pred_check
          %p136 = pneg %p55
        $region18: #{tpu_custom_call.1} parent=15 // pred_check_branch
          %138 = sbr.rel (%p136) target = $region20
        $region19: #{tpu_custom_call.1} parent=15 // pred_region
          %s139 = sand.u32 %s45, 1
          %s140 = scalar_lea.sflag [#allocation3], %s139
          %s141 = sand.u32 %s45, 1
          %s142 = smul.addr %s141, 64
          %s143 = scalar_lea.vmem [#allocation2], %s142
          %s144 = smul.u32 4, %s20
          %s145 = smul.u32 2, %s21
          %147 = vsyncadd %s140, 0
          %s148 = smul.addr %s144, 2
          %s149 = sadd.s32 %s145, %s148
          %s150 = smul.addr %s19, 8
          %s151 = sadd.s32 %s149, %s150
          %s152 = smul.addr %s151, 8
          %s153 = scalar_lea.hbm %s0, %s152
          %s154 = sshll.u32 %s153, 4
          %s155 = int_to_ptr.hbm [resolvable:$true] %s154
          %s156 = sshll.u32 %s143, 4
          %s157 = int_to_ptr.vmem [resolvable:$true] %s156
          %162 = dma.hbm_to_vmem [thread:$0]  %s155, 1024, %s157, %s140, 256, 256, 16
        $region20: #{tpu_custom_call.1} parent=15 // pred_fallthru
          _
      $region16: #{tpu_custom_call.1} parent=5 // pred_fallthru
        _
      %p163 = scmp.le.s32.totalorder 1, %s12
      %p164 = scmp.lt.s32.totalorder %s12, 3
      %p165 = pnand %p163, %p164
      %p166 = pneg %p165
      // Predicated region
      $region21: #{tpu_custom_call.1} parent=5 // pred_check
        _
      $region22: #{tpu_custom_call.1} parent=5 // pred_check_branch
        %168 = sbr.rel (%p165) target = $region24
      $region23: #{tpu_custom_call.1} parent=5 // pred_region
        %s169 = ssub.s32 %s12, 1
        %s170 = sand.u32 %s48, 1
        %s171 = scalar_lea.sflag [#allocation3], %s170
        %s172 = sand.u32 %s48, 1
        %s173 = smul.addr %s172, 64
        %s174 = scalar_lea.vmem [#allocation2], %s173
        // Predicated region
        $region25: #{tpu_custom_call.1} parent=23 // pred_check
          %p175 = pneg %p61
        $region26: #{tpu_custom_call.1} parent=23 // pred_check_branch
          %177 = sbr.rel (%p175) target = $region28
        $region27: #{tpu_custom_call.1} parent=23 // pred_region
          %179 = dma.done %s171, 1024
        $region28: #{tpu_custom_call.1} parent=23 // pred_fallthru
          _
        %s180 = sand.u32 %s48, 1
        %s181 = scalar_lea.sflag [#allocation3], %s180
        %s182 = sand.u32 %s48, 1
        %s183 = smul.addr %s182, 64
        %s184 = scalar_lea.vmem [#allocation2], %s183
        %p185 = pneg %p61
        %p186 = pneg %p58
        %p187 = pneg %p89
        %p188 = pneg %p86
        %s189 = smul.u32 4, %s23
        %p190 = scmp.lt.s32.totalorder %s22, 1
        %s191 = scalar_select %p190, %s22, 1
        %p192 = scmp.lt.s32.totalorder %s189, 3
        %s193 = scalar_select %p192, %s189, 3
        %s194 = smul.addr %s191, 4
        %s195 = sadd.s32 %s193, %s194
        %s196 = smul.addr %s195, 8
        %s197 = scalar_lea.vmem %s1, %s196
        %p198 = pneg %p117
        %p199 = pneg %p114
        %s200 = smul.u32 4, %s23
        %p201 = scmp.lt.s32.totalorder %s22, 1
        %s202 = scalar_select %p201, %s22, 1
        %p203 = scmp.lt.s32.totalorder %s200, 3
        %s204 = scalar_select %p203, %s200, 3
        %s205 = smul.addr %s202, 4
        %s206 = sadd.s32 %s204, %s205
        %s207 = smul.addr %s206, 8
        %s208 = scalar_lea.vmem %s2, %s207
        %s209 = smul.u32 4, %s23
        %s210 = smul.u32 2, %s24
        %s211 = smul.u32 4, %s23
        %p212 = scmp.lt.s32.totalorder %s22, 1
        %s213 = scalar_select %p212, %s22, 1
        %p214 = scmp.lt.s32.totalorder %s211, 3
        %s215 = scalar_select %p214, %s211, 3
        %s216 = smul.addr %s213, 4
        %s217 = sadd.s32 %s215, %s216
        %s218 = smul.addr %s217, 8
        %s219 = scalar_lea.vmem %s1, %s218
        %s220 = smul.u32 4, %s23
        %s221 = smul.u32 4, %s23
        %p222 = scmp.lt.s32.totalorder %s22, 1
        %s223 = scalar_select %p222, %s22, 1
        %p224 = scmp.lt.s32.totalorder %s221, 3
        %s225 = scalar_select %p224, %s221, 3
        %s226 = smul.addr %s223, 4
        %s227 = sadd.s32 %s225, %s226
        %s228 = smul.addr %s227, 8
        %s229 = scalar_lea.vmem %s2, %s228
        %s230 = smul.u32 4, %s23
        %p231 = scmp.eq.s32.totalorder %s24, 0
        // Predicated region
        $region29: #{tpu_custom_call.1} parent=23 // pred_check
          %p232 = pneg %p231
        $region30: #{tpu_custom_call.1} parent=23 // pred_check_branch
          %234 = sbr.rel (%p232) target = $region32
        $region31: #{tpu_custom_call.1} parent=23 // pred_region
          %vm235 = vcmask 7168
          %236 = vst.msk [vmem:[%s219] sm:$0xff] %vm235, 0.0
          %237 = vst.msk [vmem:[%s219 + $0x8] sm:$0xff] %vm235, 0.0
          %238 = vst.msk [vmem:[%s219 + $0x10] sm:$0xff] %vm235, 0.0
          %239 = vst.msk [vmem:[%s219 + $0x18] sm:$0xff] %vm235, 0.0
          %240 = vst.msk [vmem:[%s229] sm:$0xff] %vm235, -inf
          %241 = vst.msk [vmem:[%s229 + $0x8] sm:$0xff] %vm235, -inf
          %242 = vst.msk [vmem:[%s229 + $0x10] sm:$0xff] %vm235, -inf
          %243 = vst.msk [vmem:[%s229 + $0x18] sm:$0xff] %vm235, -inf
        $region32: #{tpu_custom_call.1} parent=23 // pred_fallthru
          _
        %v244 = vld [vmem:[%s174] sm:$0xff]
        %v245 = vld [vmem:[%s174 + $0x8] sm:$0xff]
        %v246 = vld [vmem:[%s174 + $0x10] sm:$0xff]
        %v247 = vld [vmem:[%s174 + $0x18] sm:$0xff]
        %v248 = vld [vmem:[%s174 + $0x20] sm:$0xff]
        %v249 = vld [vmem:[%s174 + $0x28] sm:$0xff]
        %v250 = vld [vmem:[%s174 + $0x30] sm:$0xff]
        %v251 = vld [vmem:[%s174 + $0x38] sm:$0xff]
        %v252 = vld [vmem:[%s219] sm:$0xff]
        %v253 = vld [vmem:[%s219 + $0x8] sm:$0xff]
        %v254 = vld [vmem:[%s219 + $0x10] sm:$0xff]
        %v255 = vld [vmem:[%s219 + $0x18] sm:$0xff]
        %v256 = vadd.f32 %v244, %v245
        %257 = vadd.xlane.f32.xlu0 %v256
        %v258 = vpop.xlane.xlu0 %257
        %v259 = vadd.f32 %v246, %v247
        %260 = vadd.xlane.f32.xlu0 %v259
        %v261 = vpop.xlane.xlu0 %260
        %v262 = vadd.f32 %v248, %v249
        %263 = vadd.xlane.f32.xlu0 %v262
        %v264 = vpop.xlane.xlu0 %263
        %v265 = vadd.f32 %v250, %v251
        %266 = vadd.xlane.f32.xlu0 %v265
        %v267 = vpop.xlane.xlu0 %266
        %v268 = vadd.f32 %v252, %v258
        %v269 = vadd.f32 %v253, %v261
        %v270 = vadd.f32 %v254, %v264
        %v271 = vadd.f32 %v255, %v267
        %vm272 = vcmask 7168
        %273 = vst.msk [vmem:[%s219] sm:$0xff] %vm272, %v268
        %274 = vst.msk [vmem:[%s219 + $0x8] sm:$0xff] %vm272, %v269
        %275 = vst.msk [vmem:[%s219 + $0x10] sm:$0xff] %vm272, %v270
        %276 = vst.msk [vmem:[%s219 + $0x18] sm:$0xff] %vm272, %v271
        %v277 = vld [vmem:[%s229] sm:$0xff]
        %v278 = vld [vmem:[%s229 + $0x8] sm:$0xff]
        %v279 = vld [vmem:[%s229 + $0x10] sm:$0xff]
        %v280 = vld [vmem:[%s229 + $0x18] sm:$0xff]
        %v281 = vmax.f32 %v244, %v245
        %282 = vmax.xlane.f32.xlu0 %v281
        %v283 = vpop.xlane.xlu0 %282
        %v284 = vmax.f32 %v246, %v247
        %285 = vmax.xlane.f32.xlu0 %v284
        %v286 = vpop.xlane.xlu0 %285
        %v287 = vmax.f32 %v248, %v249
        %288 = vmax.xlane.f32.xlu0 %v287
        %v289 = vpop.xlane.xlu0 %288
        %v290 = vmax.f32 %v250, %v251
        %291 = vmax.xlane.f32.xlu0 %v290
        %v292 = vpop.xlane.xlu0 %291
        %v293 = vmax.f32 %v277, %v283
        %v294 = vmax.f32 %v278, %v286
        %v295 = vmax.f32 %v279, %v289
        %v296 = vmax.f32 %v280, %v292
        %297 = vst.msk [vmem:[%s229] sm:$0xff] %vm272, %v293
        %298 = vst.msk [vmem:[%s229 + $0x8] sm:$0xff] %vm272, %v294
        %299 = vst.msk [vmem:[%s229 + $0x10] sm:$0xff] %vm272, %v295
        %300 = vst.msk [vmem:[%s229 + $0x18] sm:$0xff] %vm272, %v296
        %s301 = smul.u32 4, %s23
        %p302 = scmp.lt.s32.totalorder %s22, 1
        %s303 = scalar_select %p302, %s22, 1
        %p304 = scmp.lt.s32.totalorder %s301, 3
        %s305 = scalar_select %p304, %s301, 3
        %s306 = smul.addr %s303, 4
        %s307 = sadd.s32 %s305, %s306
        %s308 = smul.addr %s307, 8
        %s309 = scalar_lea.vmem %s1, %s308
        %s310 = smul.u32 4, %s23
        %p311 = scmp.lt.s32.totalorder %s22, 1
        %s312 = scalar_select %p311, %s22, 1
        %p313 = scmp.lt.s32.totalorder %s310, 3
        %s314 = scalar_select %p313, %s310, 3
        %s315 = smul.addr %s312, 4
        %s316 = sadd.s32 %s314, %s315
        %s317 = smul.addr %s316, 8
        %s318 = scalar_lea.vmem %s2, %s317
        // Predicated region
        $region33: #{tpu_custom_call.1} parent=23 // pred_check
          %p319 = pneg %p86
        $region34: #{tpu_custom_call.1} parent=23 // pred_check_branch
          %321 = sbr.rel (%p319) target = $region36
        $region35: #{tpu_custom_call.1} parent=23 // pred_region
          %s322 = smul.u32 4, %s23
        $region36: #{tpu_custom_call.1} parent=23 // pred_fallthru
          _
        // Predicated region
        $region37: #{tpu_custom_call.1} parent=23 // pred_check
          %p323 = pneg %p114
        $region38: #{tpu_custom_call.1} parent=23 // pred_check_branch
          %325 = sbr.rel (%p323) target = $region40
        $region39: #{tpu_custom_call.1} parent=23 // pred_region
          %s326 = smul.u32 4, %s23
        $region40: #{tpu_custom_call.1} parent=23 // pred_fallthru
          _
      $region24: #{tpu_custom_call.1} parent=5 // pred_fallthru
        _
      %p327 = scmp.le.s32.totalorder 2, %s12
      // Predicated region
      $region41: #{tpu_custom_call.1} parent=5 // pred_check
        %p328 = pneg %p327
      $region42: #{tpu_custom_call.1} parent=5 // pred_check_branch
        %330 = sbr.rel (%p328) target = $region44
      $region43: #{tpu_custom_call.1} parent=5 // pred_region
        %s331 = ssub.s32 %s12, 2
        // Predicated region
        $region45: #{tpu_custom_call.1} parent=43 // pred_check
          %p332 = pneg %p92
        $region46: #{tpu_custom_call.1} parent=43 // pred_check_branch
          %334 = sbr.rel (%p332) target = $region48
        $region47: #{tpu_custom_call.1} parent=43 // pred_region
          %s335 = smul.u32 4, %s26
          %p336 = scmp.lt.s32.totalorder %s25, 1
          %s337 = scalar_select %p336, %s25, 1
          %p338 = scmp.lt.s32.totalorder %s335, 3
          %s339 = scalar_select %p338, %s335, 3
          %s340 = smul.addr %s337, 4
          %s341 = sadd.s32 %s339, %s340
          %s342 = smul.addr %s341, 8
          %s343 = scalar_lea.vmem %s1, %s342
        $region48: #{tpu_custom_call.1} parent=43 // pred_fallthru
          _
        // Predicated region
        $region49: #{tpu_custom_call.1} parent=43 // pred_check
          %p344 = pneg %p120
        $region50: #{tpu_custom_call.1} parent=43 // pred_check_branch
          %346 = sbr.rel (%p344) target = $region52
        $region51: #{tpu_custom_call.1} parent=43 // pred_region
          %s347 = smul.u32 4, %s26
          %p348 = scmp.lt.s32.totalorder %s25, 1
          %s349 = scalar_select %p348, %s25, 1
          %p350 = scmp.lt.s32.totalorder %s347, 3
          %s351 = scalar_select %p350, %s347, 3
          %s352 = smul.addr %s349, 4
          %s353 = sadd.s32 %s351, %s352
          %s354 = smul.addr %s353, 8
          %s355 = scalar_lea.vmem %s2, %s354
        $region52: #{tpu_custom_call.1} parent=43 // pred_fallthru
          _
      $region44: #{tpu_custom_call.1} parent=5 // pred_fallthru
        _
    $region6: #{tpu_custom_call.1} parent=1 // loop_footer
      %s16 = sadd.s32 1, %s12
    $region7: #{tpu_custom_call.1} parent=1 // loop_footer_branch
      %11 = sbr.rel target = $region3
    $region8: #{tpu_custom_call.1} parent=1 // loop_exit
      _
    %356 = vsyncpa [#allocation3], 1
    %s357 = scalar_lea.sflag [#allocation3], 1
    %358 = vsyncpa %s357, 1

</llo_original>
